<compile_context>
chip_gen: v7x
topology: tpu7x:2x2x1
jax: 0.10.0
libtpu: 0.0.40
codegen_flags: <defaults>
</compile_context>

<pallas_src>
import jax
import jax.numpy as jnp
from jax.experimental import pallas as pl
from jax.experimental.pallas import tpu as pltpu

# ---- model dims (skeleton input (N, C, T, V)) ----
N, C_IN, T, V = 2, 4, 8, 16           # T*V = 128 -> lane-dense
C_OUT = 32
NUM_CLASSES = 10


def gcn_forward_kernel(x_ref, a_ref, w_ref, b_ref, fcw_ref, fcb_ref, out_ref):
    """One grid step == one sample. All big tensors are lane-dense (T*V = 128)."""
    x = x_ref[0].astype(jnp.bfloat16)          # (C_IN, T*V)   = (4, 128)
    a = a_ref[...].astype(jnp.bfloat16)        # (T*V, T*V) block-diag I_T (x) A
    w = w_ref[...].astype(jnp.bfloat16)        # (C_OUT, C_IN) = (32, 4)

    # graph aggregation over joints: einsum('ctv,vw->ctw') folded into one
    # lane-dense GEMM against the block-diagonal adjacency (no reshapes).
    xa = jnp.dot(x, a, preferred_element_type=jnp.float32)        # (4, 128) f32

    # 1x1 channel conv + bias + ReLU (bf16 operands, f32 accumulate)
    h = jnp.dot(w, xa.astype(jnp.bfloat16),
                preferred_element_type=jnp.float32)                # (32, 128)
    h = jnp.maximum(h + b_ref[...], 0.0)

    # cls head: global average pool over (T, V) -> (C_OUT, 1) lane reduce
    pooled = jnp.mean(h, axis=-1, keepdims=True)                   # (32, 1)

    # fully-connected classifier, emitted row-oriented with no relayout:
    # scores[0, j] = sum_k fc_w_t[k, j] * pooled[k, 0] + fc_b[0, j]
    scores = jnp.sum(fcw_ref[...] * pooled, axis=0, keepdims=True) \
        + fcb_ref[...]                                             # (1, NUM_CLASSES)
    out_ref[0] = scores.astype(out_ref.dtype)


def prepare_params(adj, w, b, fc_w, fc_b, t):
    """One-time parameter preprocessing into kernel-friendly layouts."""
    a_tv = jnp.kron(jnp.eye(t, dtype=adj.dtype), adj)   # (T*V, T*V) block-diagonal
    return (a_tv,
            w,                                          # (C_OUT, C_IN)
            jnp.reshape(b, (-1, 1)),                    # (C_OUT, 1)
            jnp.transpose(fc_w),                        # (C_OUT, NUM_CLASSES)
            jnp.reshape(fc_b, (1, -1)))                 # (1, NUM_CLASSES)


@jax.jit
def base_gcn_forward(x_nctv, a_tv, w, b_col, fc_w_t, fc_b_row):
    """x_nctv: (N, C_IN, T, V) skeletons -> (N, NUM_CLASSES) class scores."""
    n, c, t, v = x_nctv.shape
    tv = t * v
    c_out, num_classes = fc_w_t.shape

    # free row-major merge of the last two dims -- no transpose, no data movement
    x3 = x_nctv.reshape(n, c, tv)

    out = pl.pallas_call(
        gcn_forward_kernel,
        out_shape=jax.ShapeDtypeStruct((n, 1, num_classes), jnp.float32),
        grid=(n,),
        in_specs=[
            pl.BlockSpec((1, c, tv), lambda i: (i, 0, 0)),       # per-sample block
            pl.BlockSpec((tv, tv), lambda i: (0, 0)),            # I_T (x) A
            pl.BlockSpec((c_out, c), lambda i: (0, 0)),          # W
            pl.BlockSpec((c_out, 1), lambda i: (0, 0)),          # conv bias
            pl.BlockSpec((c_out, num_classes), lambda i: (0, 0)),# FC weight (K, NC)
            pl.BlockSpec((1, num_classes), lambda i: (0, 0)),    # FC bias
        ],
        out_specs=pl.BlockSpec((1, 1, num_classes), lambda i: (i, 0, 0)),
        compiler_params=pltpu.CompilerParams(
            dimension_semantics=("parallel",)),  # megacore sharding on v7x
    )(x3, a_tv, w, b_col, fc_w_t, fc_b_row)

    return out.reshape(n, num_classes)           # squeeze only (free)


def _reference(x_nctv, adj, w, b, fc_w, fc_b):
    """Pure-JAX reference mirroring the kernel numerics (bf16 GEMM operands,
    f32 accumulation; classifier in exact f32)."""
    xa = jnp.einsum('nctv,vw->nctw',
                    x_nctv.astype(jnp.bfloat16), adj.astype(jnp.bfloat16),
                    preferred_element_type=jnp.float32)
    h = jnp.einsum('kc,nctv->nktv',
                   w.astype(jnp.bfloat16), xa.astype(jnp.bfloat16),
                   preferred_element_type=jnp.float32)
    h = jnp.maximum(h + b.reshape(1, -1, 1, 1), 0.0)
    pooled = h.mean(axis=(2, 3))                                  # (N, C_OUT)
    scores = jnp.einsum('nc,kc->nk', pooled, fc_w,
                        precision=jax.lax.Precision.HIGHEST)
    return scores + fc_b.reshape(1, -1)


if __name__ == "__main__":
    key = jax.random.PRNGKey(0)
    k_x, k_w, k_b, k_fw, k_fb = jax.random.split(key, 5)

    # deterministic inputs / parameters (init_weights analogue)
    x = jax.random.normal(k_x, (N, C_IN, T, V), dtype=jnp.float32)

    # symmetric-normalized ring adjacency over V joints (deterministic)
    eye = jnp.eye(V, dtype=jnp.float32)
    ring = jnp.roll(eye, 1, axis=1) + jnp.roll(eye, -1, axis=1) + eye
    deg = ring.sum(axis=1)
    adj = ring / jnp.sqrt(deg[:, None] * deg[None, :])

    w = 0.1 * jax.random.normal(k_w, (C_OUT, C_IN), dtype=jnp.float32)
    b = 0.05 * jax.random.normal(k_b, (C_OUT,), dtype=jnp.float32)
    fc_w = 0.1 * jax.random.normal(k_fw, (NUM_CLASSES, C_OUT), dtype=jnp.float32)
    fc_b = 0.01 * jax.random.normal(k_fb, (NUM_CLASSES,), dtype=jnp.float32)

    params = prepare_params(adj, w, b, fc_w, fc_b, T)
    scores = jax.block_until_ready(base_gcn_forward(x, *params))

    ref = _reference(x, adj, w, b, fc_w, fc_b)
    assert scores.shape == (N, NUM_CLASSES), scores.shape
    max_err = float(jnp.max(jnp.abs(scores - ref)))
    assert jnp.allclose(scores, ref, atol=1e-4, rtol=1e-4), f"max abs err {max_err}"
    print("KERNEL_OK")
</pallas_src>

<mosaic_0001>
module attributes {stable_mosaic.version = 11 : i64} {
  func.func @gcn_forward_kernel(%arg0: i32, %arg1: memref<1x4x128xf32, #tpu.memory_space<vmem>>, %arg2: memref<128x128xf32, #tpu.memory_space<vmem>>, %arg3: memref<32x4xf32, #tpu.memory_space<vmem>>, %arg4: memref<32x1xf32, #tpu.memory_space<vmem>>, %arg5: memref<32x10xf32, #tpu.memory_space<vmem>>, %arg6: memref<1x10xf32, #tpu.memory_space<vmem>>, %arg7: memref<1x1x10xf32, #tpu.memory_space<vmem>>) attributes {dimension_semantics = [#tpu.dimension_semantics<parallel>], iteration_bounds = array<i64: 2>, scalar_prefetch = 0 : i64, scratch_operands = 0 : i64, tpu.core_type = #tpu.core_type<tc>, window_params = [{transform_indices = @transform_0, window_bounds = array<i64: 1, 4, 128>}, {pipeline_mode = #tpu.pipeline_mode<synchronous>, transform_indices = @transform_1, window_bounds = array<i64: 128, 128>}, {pipeline_mode = #tpu.pipeline_mode<synchronous>, transform_indices = @transform_2, window_bounds = array<i64: 32, 4>}, {pipeline_mode = #tpu.pipeline_mode<synchronous>, transform_indices = @transform_3, window_bounds = array<i64: 32, 1>}, {pipeline_mode = #tpu.pipeline_mode<synchronous>, transform_indices = @transform_4, window_bounds = array<i64: 32, 10>}, {pipeline_mode = #tpu.pipeline_mode<synchronous>, transform_indices = @transform_5, window_bounds = array<i64: 1, 10>}, {transform_indices = @transform_6, window_bounds = array<i64: 1, 1, 10>}]} {
    %c0 = arith.constant 0 : index
    %c0_0 = arith.constant 0 : index
    %c0_1 = arith.constant 0 : index
    %0 = vector.load %arg1[%c0, %c0_0, %c0_1] : memref<1x4x128xf32, #tpu.memory_space<vmem>>, vector<1x4x128xf32>
    %1 = vector.shape_cast %0 : vector<1x4x128xf32> to vector<4x128xf32>
    %2 = arith.truncf %1 : vector<4x128xf32> to vector<4x128xbf16>
    %c0_2 = arith.constant 0 : index
    %c0_3 = arith.constant 0 : index
    %3 = vector.load %arg2[%c0_2, %c0_3] : memref<128x128xf32, #tpu.memory_space<vmem>>, vector<128x128xf32>
    %4 = arith.truncf %3 : vector<128x128xf32> to vector<128x128xbf16>
    %c0_4 = arith.constant 0 : index
    %c0_5 = arith.constant 0 : index
    %5 = vector.load %arg3[%c0_4, %c0_5] : memref<32x4xf32, #tpu.memory_space<vmem>>, vector<32x4xf32>
    %6 = arith.truncf %5 : vector<32x4xf32> to vector<32x4xbf16>
    %cst = arith.constant dense<0.000000e+00> : vector<4x128xf32>
    %7 = tpu.matmul %2, %4, %cst {dimension_numbers = #tpu.dot_dimension_numbers<[1], [0], [0], [1], [0, 0, 1, 1], [], []>} : vector<4x128xbf16>, vector<128x128xbf16>, vector<4x128xf32> -> vector<4x128xf32>
    %8 = arith.truncf %7 : vector<4x128xf32> to vector<4x128xbf16>
    %cst_6 = arith.constant dense<0.000000e+00> : vector<32x128xf32>
    %9 = tpu.matmul %6, %8, %cst_6 {dimension_numbers = #tpu.dot_dimension_numbers<[1], [0], [0], [1], [0, 0, 1, 1], [], []>} : vector<32x4xbf16>, vector<4x128xbf16>, vector<32x128xf32> -> vector<32x128xf32>
    %c0_7 = arith.constant 0 : index
    %c0_8 = arith.constant 0 : index
    %10 = vector.load %arg4[%c0_7, %c0_8] : memref<32x1xf32, #tpu.memory_space<vmem>>, vector<32x1xf32>
    %11 = vector.broadcast %10 : vector<32x1xf32> to vector<32x128xf32>
    %12 = arith.addf %9, %11 : vector<32x128xf32>
    %cst_9 = arith.constant 0.000000e+00 : f32
    %13 = vector.broadcast %cst_9 : f32 to vector<32x128xf32>
    %14 = arith.maximumf %12, %13 : vector<32x128xf32>
    %cst_10 = arith.constant dense<0.000000e+00> : vector<32xf32>
    %15 = vector.multi_reduction <add>, %14, %cst_10 [1] : vector<32x128xf32> to vector<32xf32>
    %16 = vector.shape_cast %15 : vector<32xf32> to vector<32x1xf32>
    %cst_11 = arith.constant 1.280000e+02 : f32
    %17 = vector.broadcast %cst_11 : f32 to vector<32x1xf32>
    %18 = arith.divf %16, %17 : vector<32x1xf32>
    %c0_12 = arith.constant 0 : index
    %c0_13 = arith.constant 0 : index
    %19 = vector.load %arg5[%c0_12, %c0_13] : memref<32x10xf32, #tpu.memory_space<vmem>>, vector<32x10xf32>
    %20 = vector.broadcast %18 : vector<32x1xf32> to vector<32x10xf32>
    %21 = arith.mulf %19, %20 : vector<32x10xf32>
    %cst_14 = arith.constant dense<0.000000e+00> : vector<10xf32>
    %22 = vector.multi_reduction <add>, %21, %cst_14 [0] : vector<32x10xf32> to vector<10xf32>
    %23 = vector.shape_cast %22 : vector<10xf32> to vector<1x10xf32>
    %c0_15 = arith.constant 0 : index
    %c0_16 = arith.constant 0 : index
    %24 = vector.load %arg6[%c0_15, %c0_16] : memref<1x10xf32, #tpu.memory_space<vmem>>, vector<1x10xf32>
    %25 = arith.addf %23, %24 : vector<1x10xf32>
    %c0_17 = arith.constant 0 : index
    %c0_18 = arith.constant 0 : index
    %c0_19 = arith.constant 0 : index
    %26 = vector.load %arg7[%c0_17, %c0_18, %c0_19] : memref<1x1x10xf32, #tpu.memory_space<vmem>>, vector<1x1x10xf32>
    %27 = vector.shape_cast %26 : vector<1x1x10xf32> to vector<1x10xf32>
    %28 = vector.shape_cast %25 : vector<1x10xf32> to vector<1x1x10xf32>
    tpu.vector_store %arg7[%c0_17, %c0_18, %c0_19], %28 {strides = array<i32>} : memref<1x1x10xf32, #tpu.memory_space<vmem>>, vector<1x1x10xf32>,
    return
  }
  func.func @transform_0(%arg0: i32) -> (i32, i32, i32) {
    %c0_i32 = arith.constant 0 : i32
    %c0_i32_0 = arith.constant 0 : i32
    %c0_i32_1 = arith.constant 0 : i32
    return %arg0, %c0_i32, %c0_i32_0 : i32, i32, i32
  }
  func.func @transform_1(%arg0: i32) -> (i32, i32) {
    %c0_i32 = arith.constant 0 : i32
    %c0_i32_0 = arith.constant 0 : i32
    %c0_i32_1 = arith.constant 0 : i32
    return %c0_i32, %c0_i32_0 : i32, i32
  }
  func.func @transform_2(%arg0: i32) -> (i32, i32) {
    %c0_i32 = arith.constant 0 : i32
    %c0_i32_0 = arith.constant 0 : i32
    %c0_i32_1 = arith.constant 0 : i32
    return %c0_i32, %c0_i32_0 : i32, i32
  }
  func.func @transform_3(%arg0: i32) -> (i32, i32) {
    %c0_i32 = arith.constant 0 : i32
    %c0_i32_0 = arith.constant 0 : i32
    %c0_i32_1 = arith.constant 0 : i32
    return %c0_i32, %c0_i32_0 : i32, i32
  }
  func.func @transform_4(%arg0: i32) -> (i32, i32) {
    %c0_i32 = arith.constant 0 : i32
    %c0_i32_0 = arith.constant 0 : i32
    %c0_i32_1 = arith.constant 0 : i32
    return %c0_i32, %c0_i32_0 : i32, i32
  }
  func.func @transform_5(%arg0: i32) -> (i32, i32) {
    %c0_i32 = arith.constant 0 : i32
    %c0_i32_0 = arith.constant 0 : i32
    %c0_i32_1 = arith.constant 0 : i32
    return %c0_i32, %c0_i32_0 : i32, i32
  }
  func.func @transform_6(%arg0: i32) -> (i32, i32, i32) {
    %c0_i32 = arith.constant 0 : i32
    %c0_i32_0 = arith.constant 0 : i32
    %c0_i32_1 = arith.constant 0 : i32
    return %arg0, %c0_i32, %c0_i32_0 : i32, i32, i32
  }
}

</mosaic_0001>

<llo_original>
// kernel: base_gcn_forward.1
$region0: #{base_gcn_forward.1}
  #allocation0 [shape = 'u32[]', space=smem, size = 0x4, offset = 0x4, fixed_abs, tag = 'smem constant byte address 0x4 - core index']
  #allocation1 [shape = 'u32[144,128]{1,0:T(1,128)}', space=vmem, size = 0x12000, scoped, tag = 'internal scratch']
  %s0 = inlined_call_operand.vmem [shape: f32[2,4,128], index: 0, kind: input, shape index: {}]
  %s1 = inlined_call_operand.vmem [shape: f32[128,128], index: 1, kind: input, shape index: {}]
  %s2 = inlined_call_operand.vmem [shape: f32[32,4], index: 2, kind: input, shape index: {}]
  %s3 = inlined_call_operand.vmem [shape: f32[32,1], index: 3, kind: input, shape index: {}]
  %s4 = inlined_call_operand.vmem [shape: f32[32,10], index: 4, kind: input, shape index: {}]
  %s5 = inlined_call_operand.vmem [shape: f32[1,10], index: 5, kind: input, shape index: {}]
  %s6 = inlined_call_operand.hbm [shape: f32[2,1,10], index: 6, kind: output, shape index: {}]
  %s7 = sld [smem:[#allocation0]]
  $region57: #{base_gcn_forward.1} parent=0
    _
  %s9 = ssub.s32 1, %s7
  %s10 = scalar_select 0, %s9, %s7
  $region1: #{base_gcn_forward.1} parent=0
    #allocation2 [shape = 'u8[1024]{0}', space=vmem, size = 0x400, scoped, tag = 'output window, operand 0']
    #allocation3 [shape = 's32[2]{0}', space=sflag, size = 0x8, scoped, tag = 'scoped memory for base_gcn_forward.1']
    %11 = vsyncpa [#allocation3], 0
    %s12 = scalar_lea.sflag [#allocation3], 1
    %13 = vsyncpa %s12, 0
    loop: start=0, step=1, limit=4
    $region2: #{base_gcn_forward.1} parent=1 // loop_pre_header
      _
    $region3: #{base_gcn_forward.1} parent=1 // loop_header
      %s15 = sphi 0, %s19
      %p16 = scmp.ge.s32.totalorder %s15, 4
      %s25 = sphi 0, %s27
      %s28 = sphi 0, %s25
      %s29 = sphi 0, %s28
      %s45 = sphi 0, %s29
      %s49 = sphi 0, %s49
      %s51 = sphi 0, %s49
      %s52 = sphi 0, %s51
      %s66 = sphi 0, %s52
      %s70 = sphi 0, %s70
      %s72 = sphi 0, %s70
      %s73 = sphi 0, %s72
      %s87 = sphi 0, %s73
      %s91 = sphi 0, %s91
      %s93 = sphi 0, %s91
      %s94 = sphi 0, %s93
      %s108 = sphi 0, %s94
      %s112 = sphi 0, %s112
      %s114 = sphi 0, %s112
      %s115 = sphi 0, %s114
      %s129 = sphi 0, %s115
      %s133 = sphi 0, %s133
      %s135 = sphi 0, %s133
      %s136 = sphi 0, %s135
      %s150 = sphi 0, %s136
      %s156 = sphi 0, %s158
      %s159 = sphi 0, %s156
      %s160 = sphi 0, %s159
      %s176 = sphi 0, %s160
    $region4: #{base_gcn_forward.1} parent=1 // loop_header_branch
      %18 = sbr.rel (%p16) target = $region8
    $region5: #{base_gcn_forward.1} parent=1 // loop_body
      %s20 = ssub.s32 %s15, 1
      %s21 = ssub.s32 %s15, 2
      %s22 = sadd.s32 %s15, 1
      %s23 = ssub.s32 %s15, %s22
      %p24 = scmp.eq.s32.totalorder %s23, 0
      %s26 = sadd.s32 %s25, 1
      %s27 = scalar_select %p24, %s25, %s26
      %p30 = pneg %p24
      %p31 = scmp.eq.s32.totalorder %s15, 1
      %p32 = por %p30, %p31
      %p33 = scmp.ne.s32.totalorder %s25, %s28
      %p34 = scmp.eq.s32.totalorder %s15, 0
      %p35 = por %p33, %p34
      %p36 = scmp.ne.s32.totalorder %s25, %s28
      %p37 = scmp.eq.s32.totalorder %s20, 1
      %p38 = por %p36, %p37
      %p39 = scmp.ne.s32.totalorder %s28, %s29
      %p40 = scmp.eq.s32.totalorder %s20, 0
      %p41 = por %p39, %p40
      %p42 = scmp.ne.s32.totalorder %s28, %s29
      %p43 = scmp.eq.s32.totalorder %s21, 1
      %p44 = por %p42, %p43
      %p46 = scmp.ne.s32.totalorder %s29, %s45
      %p47 = scmp.eq.s32.totalorder %s21, 0
      %p48 = por %p46, %p47
      %s50 = sadd.s32 %s49, 1
      %p53 = scmp.eq.s32.totalorder %s15, 1
      %p54 = scmp.ne.s32.totalorder %s49, %s51
      %p55 = scmp.eq.s32.totalorder %s15, 0
      %p56 = por %p54, %p55
      %p57 = scmp.ne.s32.totalorder %s49, %s51
      %p58 = scmp.eq.s32.totalorder %s20, 1
      %p59 = por %p57, %p58
      %p60 = scmp.ne.s32.totalorder %s51, %s52
      %p61 = scmp.eq.s32.totalorder %s20, 0
      %p62 = por %p60, %p61
      %p63 = scmp.ne.s32.totalorder %s51, %s52
      %p64 = scmp.eq.s32.totalorder %s21, 1
      %p65 = por %p63, %p64
      %p67 = scmp.ne.s32.totalorder %s52, %s66
      %p68 = scmp.eq.s32.totalorder %s21, 0
      %p69 = por %p67, %p68
      %s71 = sadd.s32 %s70, 1
      %p74 = scmp.eq.s32.totalorder %s15, 1
      %p75 = scmp.ne.s32.totalorder %s70, %s72
      %p76 = scmp.eq.s32.totalorder %s15, 0
      %p77 = por %p75, %p76
      %p78 = scmp.ne.s32.totalorder %s70, %s72
      %p79 = scmp.eq.s32.totalorder %s20, 1
      %p80 = por %p78, %p79
      %p81 = scmp.ne.s32.totalorder %s72, %s73
      %p82 = scmp.eq.s32.totalorder %s20, 0
      %p83 = por %p81, %p82
      %p84 = scmp.ne.s32.totalorder %s72, %s73
      %p85 = scmp.eq.s32.totalorder %s21, 1
      %p86 = por %p84, %p85
      %p88 = scmp.ne.s32.totalorder %s73, %s87
      %p89 = scmp.eq.s32.totalorder %s21, 0
      %p90 = por %p88, %p89
      %s92 = sadd.s32 %s91, 1
      %p95 = scmp.eq.s32.totalorder %s15, 1
      %p96 = scmp.ne.s32.totalorder %s91, %s93
      %p97 = scmp.eq.s32.totalorder %s15, 0
      %p98 = por %p96, %p97
      %p99 = scmp.ne.s32.totalorder %s91, %s93
      %p100 = scmp.eq.s32.totalorder %s20, 1
      %p101 = por %p99, %p100
      %p102 = scmp.ne.s32.totalorder %s93, %s94
      %p103 = scmp.eq.s32.totalorder %s20, 0
      %p104 = por %p102, %p103
      %p105 = scmp.ne.s32.totalorder %s93, %s94
      %p106 = scmp.eq.s32.totalorder %s21, 1
      %p107 = por %p105, %p106
      %p109 = scmp.ne.s32.totalorder %s94, %s108
      %p110 = scmp.eq.s32.totalorder %s21, 0
      %p111 = por %p109, %p110
      %s113 = sadd.s32 %s112, 1
      %p116 = scmp.eq.s32.totalorder %s15, 1
      %p117 = scmp.ne.s32.totalorder %s112, %s114
      %p118 = scmp.eq.s32.totalorder %s15, 0
      %p119 = por %p117, %p118
      %p120 = scmp.ne.s32.totalorder %s112, %s114
      %p121 = scmp.eq.s32.totalorder %s20, 1
      %p122 = por %p120, %p121
      %p123 = scmp.ne.s32.totalorder %s114, %s115
      %p124 = scmp.eq.s32.totalorder %s20, 0
      %p125 = por %p123, %p124
      %p126 = scmp.ne.s32.totalorder %s114, %s115
      %p127 = scmp.eq.s32.totalorder %s21, 1
      %p128 = por %p126, %p127
      %p130 = scmp.ne.s32.totalorder %s115, %s129
      %p131 = scmp.eq.s32.totalorder %s21, 0
      %p132 = por %p130, %p131
      %s134 = sadd.s32 %s133, 1
      %p137 = scmp.eq.s32.totalorder %s15, 1
      %p138 = scmp.ne.s32.totalorder %s133, %s135
      %p139 = scmp.eq.s32.totalorder %s15, 0
      %p140 = por %p138, %p139
      %p141 = scmp.ne.s32.totalorder %s133, %s135
      %p142 = scmp.eq.s32.totalorder %s20, 1
      %p143 = por %p141, %p142
      %p144 = scmp.ne.s32.totalorder %s135, %s136
      %p145 = scmp.eq.s32.totalorder %s20, 0
      %p146 = por %p144, %p145
      %p147 = scmp.ne.s32.totalorder %s135, %s136
      %p148 = scmp.eq.s32.totalorder %s21, 1
      %p149 = por %p147, %p148
      %p151 = scmp.ne.s32.totalorder %s136, %s150
      %p152 = scmp.eq.s32.totalorder %s21, 0
      %p153 = por %p151, %p152
      %s154 = ssub.s32 %s15, %s22
      %p155 = scmp.eq.s32.totalorder %s154, 0
      %s157 = sadd.s32 %s156, 1
      %s158 = scalar_select %p155, %s156, %s157
      %p161 = pneg %p155
      %p162 = scmp.eq.s32.totalorder %s15, 1
      %p163 = por %p161, %p162
      %p164 = scmp.ne.s32.totalorder %s156, %s159
      %p165 = scmp.eq.s32.totalorder %s15, 0
      %p166 = por %p164, %p165
      %p167 = scmp.ne.s32.totalorder %s156, %s159
      %p168 = scmp.eq.s32.totalorder %s20, 1
      %p169 = por %p167, %p168
      %p170 = scmp.ne.s32.totalorder %s159, %s160
      %p171 = scmp.eq.s32.totalorder %s20, 0
      %p172 = por %p170, %p171
      %p173 = scmp.ne.s32.totalorder %s159, %s160
      %p174 = scmp.eq.s32.totalorder %s21, 1
      %p175 = por %p173, %p174
      %p177 = scmp.ne.s32.totalorder %s160, %s176
      %p178 = scmp.eq.s32.totalorder %s21, 0
      %p179 = por %p177, %p178
      %p180 = scmp.le.s32.totalorder 1, %s15
      %p181 = scmp.lt.s32.totalorder %s15, 3
      %p182 = pnand %p180, %p181
      %p183 = pneg %p182
      // Predicated region
      $region9: #{base_gcn_forward.1} parent=5 // pred_check
        _
      $region10: #{base_gcn_forward.1} parent=5 // pred_check_branch
        %185 = sbr.rel (%p182) target = $region12
      $region11: #{base_gcn_forward.1} parent=5 // pred_region
        %s186 = ssub.s32 %s15, 1
        // Predicated region
        $region13: #{base_gcn_forward.1} parent=11 // pred_check
          %p187 = pneg %p62
        $region14: #{base_gcn_forward.1} parent=11 // pred_check_branch
          %189 = sbr.rel (%p187) target = $region16
        $region15: #{base_gcn_forward.1} parent=11 // pred_region
          _
        $region16: #{base_gcn_forward.1} parent=11 // pred_fallthru
          _
        // Predicated region
        $region17: #{base_gcn_forward.1} parent=11 // pred_check
          %p190 = pneg %p83
        $region18: #{base_gcn_forward.1} parent=11 // pred_check_branch
          %192 = sbr.rel (%p190) target = $region20
        $region19: #{base_gcn_forward.1} parent=11 // pred_region
          _
        $region20: #{base_gcn_forward.1} parent=11 // pred_fallthru
          _
        // Predicated region
        $region21: #{base_gcn_forward.1} parent=11 // pred_check
          %p193 = pneg %p104
        $region22: #{base_gcn_forward.1} parent=11 // pred_check_branch
          %195 = sbr.rel (%p193) target = $region24
        $region23: #{base_gcn_forward.1} parent=11 // pred_region
          _
        $region24: #{base_gcn_forward.1} parent=11 // pred_fallthru
          _
        // Predicated region
        $region25: #{base_gcn_forward.1} parent=11 // pred_check
          %p196 = pneg %p125
        $region26: #{base_gcn_forward.1} parent=11 // pred_check_branch
          %198 = sbr.rel (%p196) target = $region28
        $region27: #{base_gcn_forward.1} parent=11 // pred_region
          _
        $region28: #{base_gcn_forward.1} parent=11 // pred_fallthru
          _
        // Predicated region
        $region29: #{base_gcn_forward.1} parent=11 // pred_check
          %p199 = pneg %p146
        $region30: #{base_gcn_forward.1} parent=11 // pred_check_branch
          %201 = sbr.rel (%p199) target = $region32
        $region31: #{base_gcn_forward.1} parent=11 // pred_region
          _
        $region32: #{base_gcn_forward.1} parent=11 // pred_fallthru
          _
      $region12: #{base_gcn_forward.1} parent=5 // pred_fallthru
        _
      %p202 = scmp.lt.s32.totalorder %s15, 2
      // Predicated region
      $region33: #{base_gcn_forward.1} parent=5 // pred_check
        %p203 = pneg %p202
      $region34: #{base_gcn_forward.1} parent=5 // pred_check_branch
        %205 = sbr.rel (%p203) target = $region36
      $region35: #{base_gcn_forward.1} parent=5 // pred_region
        // Predicated region
        $region37: #{base_gcn_forward.1} parent=35 // pred_check
          %p206 = pneg %p35
        $region38: #{base_gcn_forward.1} parent=35 // pred_check_branch
          %208 = sbr.rel (%p206) target = $region40
        $region39: #{base_gcn_forward.1} parent=35 // pred_region
          %p209 = scmp.lt.s32.totalorder %s15, 1
          %s210 = scalar_select %p209, %s15, 1
          %s211 = smul.addr %s210, 4
          %s212 = scalar_lea.vmem %s0, %s211
        $region40: #{base_gcn_forward.1} parent=35 // pred_fallthru
          _
      $region36: #{base_gcn_forward.1} parent=5 // pred_fallthru
        _
      %p213 = scmp.le.s32.totalorder 1, %s15
      %p214 = scmp.lt.s32.totalorder %s15, 3
      %p215 = pnand %p213, %p214
      %p216 = pneg %p215
      // Predicated region
      $region41: #{base_gcn_forward.1} parent=5 // pred_check
        _
      $region42: #{base_gcn_forward.1} parent=5 // pred_check_branch
        %218 = sbr.rel (%p215) target = $region44
      $region43: #{base_gcn_forward.1} parent=5 // pred_region
        %s219 = ssub.s32 %s15, 1
        %p220 = scmp.lt.s32.totalorder %s20, 1
        %s221 = scalar_select %p220, %s20, 1
        %s222 = smul.addr %s221, 4
        %s223 = scalar_lea.vmem %s0, %s222
        %p224 = pneg %p41
        %p225 = pneg %p38
        %p226 = pneg %p62
        %p227 = pneg %p59
        %p228 = pneg %p83
        %p229 = pneg %p80
        %p230 = pneg %p104
        %p231 = pneg %p101
        %p232 = pneg %p125
        %p233 = pneg %p122
        %p234 = pneg %p146
        %p235 = pneg %p143
        %p236 = pneg %p172
        %p237 = pneg %p169
        %s238 = sand.u32 %s159, 1
        %s239 = scalar_lea.sflag [#allocation3], %s238
        %s240 = sand.u32 %s159, 1
        %s241 = scalar_lea.vmem [#allocation2], %s240
        %p242 = scmp.lt.s32.totalorder %s20, 1
        %s243 = scalar_select %p242, %s20, 1
        %s244 = smul.addr %s243, 4
        %s245 = scalar_lea.vmem %s0, %s244
        %v247 = vld [vmem:[%s245] sm:$0xf]
        %v248 = vpack.c.bf16 %v247, %v247
        %v249 = vld [vmem:[%s1] sm:$0xff]
        %v250 = vld [vmem:[%s1 + $0x8] sm:$0xff]
        %v251 = vld [vmem:[%s1 + $0x10] sm:$0xff]
        %v252 = vld [vmem:[%s1 + $0x18] sm:$0xff]
        %v253 = vld [vmem:[%s1 + $0x20] sm:$0xff]
        %v254 = vld [vmem:[%s1 + $0x28] sm:$0xff]
        %v255 = vld [vmem:[%s1 + $0x30] sm:$0xff]
        %v256 = vld [vmem:[%s1 + $0x38] sm:$0xff]
        %v257 = vld [vmem:[%s1 + $0x40] sm:$0xff]
        %v258 = vld [vmem:[%s1 + $0x48] sm:$0xff]
        %v259 = vld [vmem:[%s1 + $0x50] sm:$0xff]
        %v260 = vld [vmem:[%s1 + $0x58] sm:$0xff]
        %v261 = vld [vmem:[%s1 + $0x60] sm:$0xff]
        %v262 = vld [vmem:[%s1 + $0x68] sm:$0xff]
        %v263 = vld [vmem:[%s1 + $0x70] sm:$0xff]
        %v264 = vld [vmem:[%s1 + $0x78] sm:$0xff]
        %v265 = vpack.c.bf16 %v250, %v249
        %v266 = vpack.c.bf16 %v252, %v251
        %v267 = vpack.c.bf16 %v254, %v253
        %v268 = vpack.c.bf16 %v256, %v255
        %v269 = vpack.c.bf16 %v258, %v257
        %v270 = vpack.c.bf16 %v260, %v259
        %v271 = vpack.c.bf16 %v262, %v261
        %v272 = vpack.c.bf16 %v264, %v263
        %v273 = vld [vmem:[%s2] sm:$0xff]
        %v274 = vld [vmem:[%s2 + $0x8] sm:$0xff]
        %v275 = vld [vmem:[%s2 + $0x10] sm:$0xff]
        %v276 = vld [vmem:[%s2 + $0x18] sm:$0xff]
        %v277 = vpack.c.bf16 %v274, %v273
        %v278 = vpack.c.bf16 %v276, %v275
        %279 = vmatprep.subr.bf16.mxu0 0
        %280 = vmatpush1.bf16.msra.mxu0 %v265
        %281 = vmatprep.subr.bf16.mxu0 0
        %282 = vmatpush1.bf16.msra.mxu0 %v266
        %283 = vmatprep.subr.bf16.mxu0 0
        %284 = vmatpush1.bf16.msra.mxu0 %v267
        %285 = vmatprep.subr.bf16.mxu0 0
        %286 = vmatpush1.bf16.msra.mxu0 %v268
        %287 = vmatprep.subr.bf16.mxu0 0
        %288 = vmatpush1.bf16.msra.mxu0 %v269
        %289 = vmatprep.subr.bf16.mxu0 0
        %290 = vmatpush1.bf16.msra.mxu0 %v270
        %291 = vmatprep.subr.bf16.mxu0 0
        %292 = vmatpush1.bf16.msra.mxu0 %v271
        %293 = vmatprep.subr.bf16.mxu0 0
        %294 = vmatpush1.bf16.msra.mxu0 %v272
        %295 = vmatprep.subr.bf16.mxu0 0
        %296 = vmatpush1.bf16.msra.mxu0 0
        %297 = vmatprep.subr.bf16.mxu0 0
        %298 = vmatpush1.bf16.msra.mxu0 0
        %299 = vmatprep.subr.bf16.mxu0 0
        %300 = vmatpush1.bf16.msra.mxu0 0
        %301 = vmatprep.subr.bf16.mxu0 0
        %302 = vmatpush1.bf16.msra.mxu0 0
        %303 = vmatprep.subr.bf16.mxu0 0
        %304 = vmatpush1.bf16.msra.mxu0 0
        %305 = vmatprep.subr.bf16.mxu0 0
        %306 = vmatpush1.bf16.msra.mxu0 0
        %307 = vmatprep.subr.bf16.mxu0 0
        %308 = vmatpush1.bf16.msra.mxu0 0
        %309 = vmatprep.subr.bf16.mxu0 0
        %310 = vmatpush1.bf16.msra.mxu0 0
        %311 = vmatprep.mubr.bf16.mxu0 0
        %312 = vmatmul.mubr.bf16.gmra.mrb[0].mxu0 %v248
        %v313 = vpop.f32.mrb[0].mxu0
        %v314 = vadd.f32 0.0, %v313
        %v315 = vpop.f32.mrb[0].mxu0
        %v316 = vpop.f32.mrb[0].mxu0
        %v317 = vpop.f32.mrb[0].mxu0
        %318 = vdwg.mxu0
        %v319 = vpack.c.bf16 %v314, %v314
        %v320 = vld [vmem:[%s3] sm:$0xff]
        %v321 = vld [vmem:[%s3 + $0x8] sm:$0xff]
        %v322 = vld [vmem:[%s3 + $0x10] sm:$0xff]
        %v323 = vld [vmem:[%s3 + $0x18] sm:$0xff]
        %325 = vset.pattern.permute.xlu0 0
        %326 = vperm.xlu0 %325, %v320
        %v327 = vpop.permute.xlu0 %326
        %330 = vset.pattern.permute.xlu0 0
        %331 = vperm.xlu0 %330, %v321
        %v332 = vpop.permute.xlu0 %331
        %335 = vset.pattern.permute.xlu0 0
        %336 = vperm.xlu0 %335, %v322
        %v337 = vpop.permute.xlu0 %336
        %340 = vset.pattern.permute.xlu0 0
        %341 = vperm.xlu0 %340, %v323
        %v342 = vpop.permute.xlu0 %341
        %vm344 = vcmask 31744
        %v346 = vsel %vm344, %v277, 0
        %v349 = vsel %vm344, %v278, 0
        %vm351 = vcmask 1041408
        %v353 = vsel %vm351, %v319, 0
        %355 = vmatprep.subr.bf16.mxu0 0
        %356 = vmatpush1.bf16.msra.mxu0 %v353
        %357 = vmatprep.subr.bf16.mxu0 0
        %358 = vmatpush1.bf16.msra.mxu0 0
        %359 = vmatprep.subr.bf16.mxu0 0
        %360 = vmatpush1.bf16.msra.mxu0 0
        %361 = vmatprep.subr.bf16.mxu0 0
        %362 = vmatpush1.bf16.msra.mxu0 0
        %363 = vmatprep.subr.bf16.mxu0 0
        %364 = vmatpush1.bf16.msra.mxu0 0
        %365 = vmatprep.subr.bf16.mxu0 0
        %366 = vmatpush1.bf16.msra.mxu0 0
        %367 = vmatprep.subr.bf16.mxu0 0
        %368 = vmatpush1.bf16.msra.mxu0 0
        %369 = vmatprep.subr.bf16.mxu0 0
        %370 = vmatpush1.bf16.msra.mxu0 0
        %371 = vmatprep.subr.bf16.mxu0 0
        %372 = vmatpush1.bf16.msra.mxu0 0
        %373 = vmatprep.subr.bf16.mxu0 0
        %374 = vmatpush1.bf16.msra.mxu0 0
        %375 = vmatprep.subr.bf16.mxu0 0
        %376 = vmatpush1.bf16.msra.mxu0 0
        %377 = vmatprep.subr.bf16.mxu0 0
        %378 = vmatpush1.bf16.msra.mxu0 0
        %379 = vmatprep.subr.bf16.mxu0 0
        %380 = vmatpush1.bf16.msra.mxu0 0
        %381 = vmatprep.subr.bf16.mxu0 0
        %382 = vmatpush1.bf16.msra.mxu0 0
        %383 = vmatprep.subr.bf16.mxu0 0
        %384 = vmatpush1.bf16.msra.mxu0 0
        %385 = vmatprep.subr.bf16.mxu0 0
        %386 = vmatpush1.bf16.msra.mxu0 0
        %387 = vmatprep.mubr.bf16.mxu0 0
        %388 = vmatmul.mubr.bf16.gmra.mrb[0].mxu0 %v346
        %v389 = vpop.f32.mrb[0].mxu0
        %v390 = vadd.f32 %v327, %v389
        %v391 = vpop.f32.mrb[0].mxu0
        %v392 = vpop.f32.mrb[0].mxu0
        %v393 = vadd.f32 %v332, %v392
        %v394 = vpop.f32.mrb[0].mxu0
        %395 = vmatprep.mubr.bf16.mxu0 0
        %396 = vmatmul.mubr.bf16.gmra.mrb[0].mxu0 %v349
        %v397 = vpop.f32.mrb[0].mxu0
        %v398 = vadd.f32 %v337, %v397
        %v399 = vpop.f32.mrb[0].mxu0
        %v400 = vpop.f32.mrb[0].mxu0
        %v401 = vadd.f32 %v342, %v400
        %v402 = vpop.f32.mrb[0].mxu0
        %403 = vdwg.mxu0
        %v404 = vmax.f32 %v390, 0.0
        %v405 = vmax.f32 %v393, 0.0
        %v406 = vmax.f32 %v398, 0.0
        %v407 = vmax.f32 %v401, 0.0
        %408 = vadd.xlane.f32.xlu0 %v404
        %v409 = vpop.xlane.xlu0 %408
        %410 = vadd.xlane.f32.xlu0 %v405
        %v411 = vpop.xlane.xlu0 %410
        %412 = vadd.xlane.f32.xlu0 %v406
        %v413 = vpop.xlane.xlu0 %412
        %414 = vadd.xlane.f32.xlu0 %v407
        %v415 = vpop.xlane.xlu0 %414
        %v416 = vrcp.pop 128.0
        %v417 = vmul.f32 %v409, %v416
        %v418 = vmul.f32 %v411, %v416
        %v419 = vmul.f32 %v413, %v416
        %v420 = vmul.f32 %v415, %v416
        %v421 = vld [vmem:[%s4] sm:$0xff]
        %v422 = vld [vmem:[%s4 + $0x8] sm:$0xff]
        %v423 = vld [vmem:[%s4 + $0x10] sm:$0xff]
        %v424 = vld [vmem:[%s4 + $0x18] sm:$0xff]
        %v425 = vmul.f32 %v421, %v417
        %v426 = vmul.f32 %v422, %v418
        %v427 = vmul.f32 %v423, %v419
        %v428 = vmul.f32 %v424, %v420
        %vm429 = vcmask 80896
        %v430 = vsel %vm429, %v425, 0.0
        %v431 = vsel %vm429, %v426, 0.0
        %v432 = vadd.f32 %v430, %v431
        %v433 = vsel %vm429, %v427, 0.0
        %v434 = vadd.f32 %v432, %v433
        %v435 = vsel %vm429, %v428, 0.0
        %v436 = vadd.f32 %v434, %v435
        %v437 = vrot.slane %v436, 4
        %v438 = vadd.f32 %v436, %v437
        %v439 = vrot.slane %v438, 2
        %v440 = vadd.f32 %v438, %v439
        %v441 = vrot.slane %v440, 1
        %v442 = vadd.f32 %v440, %v441
        %v443 = vld [vmem:[%s5] sm:$0x1]
        %v444 = vadd.f32 %v442, %v443
        %vm445 = vcmask 73728
        %446 = vst.msk [vmem:[%s241] sm:$0x1] %vm445, %v444
        %s447 = sand.u32 %s159, 1
        %s448 = scalar_lea.sflag [#allocation3], %s447
        %s449 = sand.u32 %s159, 1
        %s450 = scalar_lea.vmem [#allocation2], %s449
        // Predicated region
        $region45: #{base_gcn_forward.1} parent=43 // pred_check
          %p451 = pneg %p169
        $region46: #{base_gcn_forward.1} parent=43 // pred_check_branch
          %453 = sbr.rel (%p451) target = $region48
        $region47: #{base_gcn_forward.1} parent=43 // pred_region
          %s455 = ssub.s32 16, 16
          %456 = vsyncadd %s448, %s455
          %s457 = smul.addr %s20, 16
          %s458 = scalar_lea.hbm %s6, %s457
          %s460 = sshll.u32 %s450, 4
          %s461 = int_to_ptr.vmem [resolvable:$true] %s460
          %463 = dma.vmem_to_hbm [thread:$0]  %s461, 16, %s458, %s448
        $region48: #{base_gcn_forward.1} parent=43 // pred_fallthru
          _
      $region44: #{base_gcn_forward.1} parent=5 // pred_fallthru
        _
      %p464 = scmp.le.s32.totalorder 2, %s15
      // Predicated region
      $region49: #{base_gcn_forward.1} parent=5 // pred_check
        %p465 = pneg %p464
      $region50: #{base_gcn_forward.1} parent=5 // pred_check_branch
        %467 = sbr.rel (%p465) target = $region52
      $region51: #{base_gcn_forward.1} parent=5 // pred_region
        %s468 = ssub.s32 %s15, 2
        // Predicated region
        $region53: #{base_gcn_forward.1} parent=51 // pred_check
          %p469 = pneg %p175
        $region54: #{base_gcn_forward.1} parent=51 // pred_check_branch
          %471 = sbr.rel (%p469) target = $region56
        $region55: #{base_gcn_forward.1} parent=51 // pred_region
          %s472 = sand.u32 %s160, 1
          %s473 = scalar_lea.sflag [#allocation3], %s472
          %s474 = sand.u32 %s160, 1
          %s475 = scalar_lea.vmem [#allocation2], %s474
          %476 = dma.done %s473, 16
        $region56: #{base_gcn_forward.1} parent=51 // pred_fallthru
          _
      $region52: #{base_gcn_forward.1} parent=5 // pred_fallthru
        _
    $region6: #{base_gcn_forward.1} parent=1 // loop_footer
      %s19 = sadd.s32 1, %s15
    $region7: #{base_gcn_forward.1} parent=1 // loop_footer_branch
      %14 = sbr.rel target = $region3
    $region8: #{base_gcn_forward.1} parent=1 // loop_exit
      _
    %477 = vsyncpa [#allocation3], 1
    %s478 = scalar_lea.sflag [#allocation3], 1
    %479 = vsyncpa %s478, 1

</llo_original>
